<compile_context>
chip_gen: v6e
topology: v6e:2x2x1
jax: 0.10.0
libtpu: 0.0.40
codegen_flags: <defaults>
</compile_context>

<pallas_src>
import functools

import jax
import jax.numpy as jnp
from jax.experimental import pallas as pl
from jax.experimental.pallas import tpu as pltpu

LANE = 128  # vreg lane width


def _round_up(n, m):
    return ((n + m - 1) // m) * m


def _pad2d(a, rows, cols):
    return jnp.pad(a, ((0, rows - a.shape[0]), (0, cols - a.shape[1])))


def _choose_tm(B, block_rows):
    """Row tile: multiple of 16 (bf16 sublane packing), minimal tail padding,
    and >= 2 grid steps for mid/large batches so v7x's 2 TCs both get work."""
    n_tiles = max(1, -(-B // block_rows))
    if B >= 256:
        n_tiles = max(n_tiles, 2)
    tm = _round_up(-(-B // n_tiles), 16)
    return min(tm, _round_up(block_rows, 16))


def _make_mlp_kernel(h1p, h2p, op):
    """Kernel closure over padded (lane-dense) layer widths."""

    def mlp_kernel(x_ref, w1_ref, w2_ref, w3_ref, b_ref, o_ref):
        # x and all weights arrive as bf16; matmuls accumulate in f32 on the
        # MXU; bias-add / ReLU run in f32 on the VPU.
        x = x_ref[...]

        h1 = jnp.dot(x, w1_ref[...], preferred_element_type=jnp.float32)
        h1 = jnp.maximum(h1 + b_ref[0:1, :h1p], 0.0)

        h2 = jnp.dot(h1.astype(jnp.bfloat16), w2_ref[...],
                     preferred_element_type=jnp.float32)
        h2 = jnp.maximum(h2 + b_ref[1:2, :h2p], 0.0)

        out = jnp.dot(h2.astype(jnp.bfloat16), w3_ref[...],
                      preferred_element_type=jnp.float32)
        o_ref[...] = (out + b_ref[2:3, :op]).astype(o_ref.dtype)

    return mlp_kernel


def make_mlp(w1, b1, w2, b2, w3, b3, *, block_rows=512):
    """Pad/cast parameters ONCE; return a jitted forward(x) -> [B, n_output].

    Weights are stored [in, out] (i.e. torch weight.T).
    Note: matmuls use bf16 inputs with f32 accumulation (MXU-native); this is
    a documented, intentional divergence from torch's f32 matmuls.
    """
    F, H1 = w1.shape
    H2 = w2.shape[1]
    OUT = w3.shape[1]

    # K dim of layer 1 only needs sublane alignment; N dims are lane-dense.
    Fp = _round_up(F, 8)
    H1p = _round_up(H1, LANE)
    H2p = _round_up(H2, LANE)
    Op = _round_up(OUT, LANE)
    Wmax = max(H1p, H2p, Op)

    # One-time parameter prep (zero padding is numerically exact: zero weight
    # cols + zero bias + ReLU stay zero).
    w1p = _pad2d(jnp.asarray(w1), Fp, H1p).astype(jnp.bfloat16)
    w2p = _pad2d(jnp.asarray(w2), H1p, H2p).astype(jnp.bfloat16)
    w3p = _pad2d(jnp.asarray(w3), H2p, Op).astype(jnp.bfloat16)
    bpack = jnp.zeros((8, Wmax), jnp.float32)
    bpack = bpack.at[0, :H1].set(b1).at[1, :H2].set(b2).at[2, :OUT].set(b3)

    kernel = _make_mlp_kernel(H1p, H2p, Op)

    def forward(x):
        B = x.shape[0]
        assert x.shape[1] == F, "feature dim mismatch"

        TM = _choose_tm(B, block_rows)
        Bp = _round_up(B, TM)

        # Only per-call work on x: bf16 cast (+ pad only if actually needed).
        xp = x.astype(jnp.bfloat16)
        if (Bp, Fp) != (B, F):
            xp = jnp.pad(xp, ((0, Bp - B), (0, Fp - F)))

        out_padded = pl.pallas_call(
            kernel,
            out_shape=jax.ShapeDtypeStruct((Bp, Op), jnp.float32),
            grid_spec=pl.GridSpec(
                grid=(Bp // TM,),
                in_specs=[
                    pl.BlockSpec((TM, Fp), lambda i: (i, 0)),    # x: batch-tiled, natural K width
                    pl.BlockSpec((Fp, H1p), lambda i: (0, 0)),   # w1: VMEM-resident
                    pl.BlockSpec((H1p, H2p), lambda i: (0, 0)),  # w2: VMEM-resident
                    pl.BlockSpec((H2p, Op), lambda i: (0, 0)),   # w3: VMEM-resident
                    pl.BlockSpec((8, Wmax), lambda i: (0, 0)),   # packed biases (one vreg)
                ],
                out_specs=pl.BlockSpec((TM, Op), lambda i: (i, 0)),  # lane-dense out
            ),
            compiler_params=pltpu.CompilerParams(
                dimension_semantics=("parallel",),  # v7x: shard batch across 2 TCs
            ),
        )(xp, w1p, w2p, w3p, bpack)

        if (Bp, Op) != (B, OUT):
            out_padded = out_padded[:B, :OUT]
        return out_padded

    return jax.jit(forward)


def init_linear(key, fan_in, fan_out):
    # PyTorch-style uniform(-1/sqrt(fan_in), 1/sqrt(fan_in)).
    kw, kb = jax.random.split(key)
    bound = 1.0 / jnp.sqrt(fan_in)
    w = jax.random.uniform(kw, (fan_in, fan_out), jnp.float32, -bound, bound)
    b = jax.random.uniform(kb, (fan_out,), jnp.float32, -bound, bound)
    return w, b


if __name__ == "__main__":
    # Net(n_feature=16, n_hidden1=32, n_hidden2=32, n_output=8), batch=8
    B, n_feature, n_hidden1, n_hidden2, n_output = 8, 16, 32, 32, 8

    key = jax.random.PRNGKey(0)
    kx, k1, k2, k3 = jax.random.split(key, 4)

    x = jax.random.normal(kx, (B, n_feature), jnp.float32)
    w1, b1 = init_linear(k1, n_feature, n_hidden1)
    w2, b2 = init_linear(k2, n_hidden1, n_hidden2)
    w3, b3 = init_linear(k3, n_hidden2, n_output)

    forward = make_mlp(w1, b1, w2, b2, w3, b3)   # one-time param prep
    out = jax.block_until_ready(forward(x))
    assert out.shape == (B, n_output)

    # Structural reference with the same bf16-input / f32-accumulate matmuls.
    bf = jnp.bfloat16
    ref_bf = jnp.maximum(jnp.dot(x.astype(bf), w1.astype(bf),
                                 preferred_element_type=jnp.float32) + b1, 0.0)
    ref_bf = jnp.maximum(jnp.dot(ref_bf.astype(bf), w2.astype(bf),
                                 preferred_element_type=jnp.float32) + b2, 0.0)
    ref_bf = jnp.dot(ref_bf.astype(bf), w3.astype(bf),
                     preferred_element_type=jnp.float32) + b3
    assert jnp.allclose(out, ref_bf, atol=1e-3, rtol=1e-3)

    # Full-precision reference (PyTorch-equivalent semantics), loose tolerance
    # for the bf16 MXU inputs.
    ref = jnp.maximum(x @ w1 + b1, 0.0)
    ref = jnp.maximum(ref @ w2 + b2, 0.0)
    ref = ref @ w3 + b3
    assert jnp.allclose(out, ref, atol=5e-2, rtol=5e-2)

    print("KERNEL_OK")
</pallas_src>

<mosaic_0001>
module attributes {stable_mosaic.version = 11 : i64} {
  func.func @mlp_kernel(%arg0: i32, %arg1: memref<16x16xbf16, #tpu.memory_space<vmem>>, %arg2: memref<16x128xbf16, #tpu.memory_space<vmem>>, %arg3: memref<128x128xbf16, #tpu.memory_space<vmem>>, %arg4: memref<128x128xbf16, #tpu.memory_space<vmem>>, %arg5: memref<8x128xf32, #tpu.memory_space<vmem>>, %arg6: memref<16x128xf32, #tpu.memory_space<vmem>>) attributes {dimension_semantics = [#tpu.dimension_semantics<parallel>], iteration_bounds = array<i64: 1>, scalar_prefetch = 0 : i64, scratch_operands = 0 : i64, tpu.core_type = #tpu.core_type<tc>, window_params = [{transform_indices = @transform_0, window_bounds = array<i64: 16, 16>}, {pipeline_mode = #tpu.pipeline_mode<synchronous>, transform_indices = @transform_1, window_bounds = array<i64: 16, 128>}, {pipeline_mode = #tpu.pipeline_mode<synchronous>, transform_indices = @transform_2, window_bounds = array<i64: 128, 128>}, {pipeline_mode = #tpu.pipeline_mode<synchronous>, transform_indices = @transform_3, window_bounds = array<i64: 128, 128>}, {pipeline_mode = #tpu.pipeline_mode<synchronous>, transform_indices = @transform_4, window_bounds = array<i64: 8, 128>}, {transform_indices = @transform_5, window_bounds = array<i64: 16, 128>}]} {
    %c0 = arith.constant 0 : index
    %c0_0 = arith.constant 0 : index
    %0 = vector.load %arg1[%c0, %c0_0] : memref<16x16xbf16, #tpu.memory_space<vmem>>, vector<16x16xbf16>
    %c0_1 = arith.constant 0 : index
    %c0_2 = arith.constant 0 : index
    %1 = vector.load %arg2[%c0_1, %c0_2] : memref<16x128xbf16, #tpu.memory_space<vmem>>, vector<16x128xbf16>
    %cst = arith.constant dense<0.000000e+00> : vector<16x128xf32>
    %2 = tpu.matmul %0, %1, %cst {dimension_numbers = #tpu.dot_dimension_numbers<[1], [0], [0], [1], [0, 0, 1, 1], [], []>} : vector<16x16xbf16>, vector<16x128xbf16>, vector<16x128xf32> -> vector<16x128xf32>
    %c0_3 = arith.constant 0 : index
    %c0_4 = arith.constant 0 : index
    %3 = vector.load %arg5[%c0_3, %c0_4] : memref<8x128xf32, #tpu.memory_space<vmem>>, vector<1x128xf32>
    %4 = vector.broadcast %3 : vector<1x128xf32> to vector<16x128xf32>
    %5 = arith.addf %2, %4 : vector<16x128xf32>
    %cst_5 = arith.constant 0.000000e+00 : f32
    %6 = vector.broadcast %cst_5 : f32 to vector<16x128xf32>
    %7 = arith.maximumf %5, %6 : vector<16x128xf32>
    %8 = arith.truncf %7 : vector<16x128xf32> to vector<16x128xbf16>
    %c0_6 = arith.constant 0 : index
    %c0_7 = arith.constant 0 : index
    %9 = vector.load %arg3[%c0_6, %c0_7] : memref<128x128xbf16, #tpu.memory_space<vmem>>, vector<128x128xbf16>
    %cst_8 = arith.constant dense<0.000000e+00> : vector<16x128xf32>
    %10 = tpu.matmul %8, %9, %cst_8 {dimension_numbers = #tpu.dot_dimension_numbers<[1], [0], [0], [1], [0, 0, 1, 1], [], []>} : vector<16x128xbf16>, vector<128x128xbf16>, vector<16x128xf32> -> vector<16x128xf32>
    %c1 = arith.constant 1 : index
    %c0_9 = arith.constant 0 : index
    %11 = vector.load %arg5[%c1, %c0_9] : memref<8x128xf32, #tpu.memory_space<vmem>>, vector<1x128xf32>
    %12 = vector.broadcast %11 : vector<1x128xf32> to vector<16x128xf32>
    %13 = arith.addf %10, %12 : vector<16x128xf32>
    %cst_10 = arith.constant 0.000000e+00 : f32
    %14 = vector.broadcast %cst_10 : f32 to vector<16x128xf32>
    %15 = arith.maximumf %13, %14 : vector<16x128xf32>
    %16 = arith.truncf %15 : vector<16x128xf32> to vector<16x128xbf16>
    %c0_11 = arith.constant 0 : index
    %c0_12 = arith.constant 0 : index
    %17 = vector.load %arg4[%c0_11, %c0_12] : memref<128x128xbf16, #tpu.memory_space<vmem>>, vector<128x128xbf16>
    %cst_13 = arith.constant dense<0.000000e+00> : vector<16x128xf32>
    %18 = tpu.matmul %16, %17, %cst_13 {dimension_numbers = #tpu.dot_dimension_numbers<[1], [0], [0], [1], [0, 0, 1, 1], [], []>} : vector<16x128xbf16>, vector<128x128xbf16>, vector<16x128xf32> -> vector<16x128xf32>
    %c2 = arith.constant 2 : index
    %c0_14 = arith.constant 0 : index
    %19 = vector.load %arg5[%c2, %c0_14] : memref<8x128xf32, #tpu.memory_space<vmem>>, vector<1x128xf32>
    %20 = vector.broadcast %19 : vector<1x128xf32> to vector<16x128xf32>
    %21 = arith.addf %18, %20 : vector<16x128xf32>
    %c0_15 = arith.constant 0 : index
    %c0_16 = arith.constant 0 : index
    %22 = vector.load %arg6[%c0_15, %c0_16] : memref<16x128xf32, #tpu.memory_space<vmem>>, vector<16x128xf32>
    tpu.vector_store %arg6[%c0_15, %c0_16], %21 {strides = array<i32>} : memref<16x128xf32, #tpu.memory_space<vmem>>, vector<16x128xf32>,
    return
  }
  func.func @transform_0(%arg0: i32) -> (i32, i32) {
    %c0_i32 = arith.constant 0 : i32
    %c0_i32_0 = arith.constant 0 : i32
    return %arg0, %c0_i32 : i32, i32
  }
  func.func @transform_1(%arg0: i32) -> (i32, i32) {
    %c0_i32 = arith.constant 0 : i32
    %c0_i32_0 = arith.constant 0 : i32
    %c0_i32_1 = arith.constant 0 : i32
    return %c0_i32, %c0_i32_0 : i32, i32
  }
  func.func @transform_2(%arg0: i32) -> (i32, i32) {
    %c0_i32 = arith.constant 0 : i32
    %c0_i32_0 = arith.constant 0 : i32
    %c0_i32_1 = arith.constant 0 : i32
    return %c0_i32, %c0_i32_0 : i32, i32
  }
  func.func @transform_3(%arg0: i32) -> (i32, i32) {
    %c0_i32 = arith.constant 0 : i32
    %c0_i32_0 = arith.constant 0 : i32
    %c0_i32_1 = arith.constant 0 : i32
    return %c0_i32, %c0_i32_0 : i32, i32
  }
  func.func @transform_4(%arg0: i32) -> (i32, i32) {
    %c0_i32 = arith.constant 0 : i32
    %c0_i32_0 = arith.constant 0 : i32
    %c0_i32_1 = arith.constant 0 : i32
    return %c0_i32, %c0_i32_0 : i32, i32
  }
  func.func @transform_5(%arg0: i32) -> (i32, i32) {
    %c0_i32 = arith.constant 0 : i32
    %c0_i32_0 = arith.constant 0 : i32
    return %arg0, %c0_i32 : i32, i32
  }
}

</mosaic_0001>

<llo_original>
// kernel: forward.1
$region0: #{forward.1}
  #allocation0 [shape = 'u32[]', space=smem, size = 0x4, offset = 0x4, fixed_abs, tag = 'smem constant byte address 0x4 - core index']
  #allocation1 [shape = 'u32[144,128]{1,0:T(1,128)}', space=vmem, size = 0x12000, scoped, tag = 'internal scratch']
  %s0 = inlined_call_operand.vmem [shape: bf16[16,16], index: 0, kind: input, shape index: {}]
  %s1 = inlined_call_operand.vmem [shape: bf16[16,128], index: 1, kind: input, shape index: {}]
  %s2 = inlined_call_operand.hbm [shape: bf16[128,128], index: 2, kind: input, shape index: {}]
  %s3 = inlined_call_operand.hbm [shape: bf16[128,128], index: 3, kind: input, shape index: {}]
  %s4 = inlined_call_operand.vmem [shape: f32[8,128], index: 4, kind: input, shape index: {}]
  %s5 = inlined_call_operand.vmem [shape: f32[16,128], index: 5, kind: output, shape index: {}]
  %s6 = sld [smem:[#allocation0]]
  $region38: #{forward.1} parent=0
    _
  %s8 = ssub.s32 1, %s6
  %s9 = scalar_select 0, %s8, %s6
  $region1: #{forward.1} parent=0
    #allocation2 [shape = 'u8[32768]{0}', space=vmem, size = 0x8000, scoped, tag = 'input window, operand 2, single buffered']
    #allocation3 [shape = 's32[1]{0}', space=sflag, size = 0x4, scoped, tag = 'scoped memory for forward.1']
    #allocation4 [shape = 'u8[32768]{0}', space=vmem, size = 0x8000, scoped, tag = 'input window, operand 3, single buffered']
    #allocation5 [shape = 's32[1]{0}', space=sflag, size = 0x4, scoped, tag = 'scoped memory for forward.1']
    %10 = vsyncpa [#allocation3], 0
    %11 = vsyncpa [#allocation5], 0
    // Predicated region
    $region2: #{forward.1} parent=1 // pred_check
      _
    $region3: #{forward.1} parent=1 // pred_check_branch
      %13 = sbr.rel (0) target = $region5
    $region4: #{forward.1} parent=1 // pred_region
      _
    $region5: #{forward.1} parent=1 // pred_fallthru
      _
    // Predicated region
    $region6: #{forward.1} parent=1 // pred_check
      _
    $region7: #{forward.1} parent=1 // pred_check_branch
      %15 = sbr.rel (0) target = $region9
    $region8: #{forward.1} parent=1 // pred_region
      _
    $region9: #{forward.1} parent=1 // pred_fallthru
      _
    // Predicated region
    $region10: #{forward.1} parent=1 // pred_check
      _
    $region11: #{forward.1} parent=1 // pred_check_branch
      %17 = sbr.rel (0) target = $region13
    $region12: #{forward.1} parent=1 // pred_region
      %s19 = ssub.s32 1024, 1024
      %20 = vsyncadd [#allocation3], %s19
      %s21 = sshll.u32 [#allocation2], 4
      %s22 = int_to_ptr.vmem [resolvable:$true] %s21
      %27 = dma.hbm_to_vmem [thread:$0]  %s2, 1024, %s22, [#allocation3], 64, 64, 4
    $region13: #{forward.1} parent=1 // pred_fallthru
      _
    // Predicated region
    $region14: #{forward.1} parent=1 // pred_check
      _
    $region15: #{forward.1} parent=1 // pred_check_branch
      %29 = sbr.rel (0) target = $region17
    $region16: #{forward.1} parent=1 // pred_region
      %s31 = ssub.s32 1024, 1024
      %32 = vsyncadd [#allocation5], %s31
      %s33 = sshll.u32 [#allocation4], 4
      %s34 = int_to_ptr.vmem [resolvable:$true] %s33
      %39 = dma.hbm_to_vmem [thread:$0]  %s3, 1024, %s34, [#allocation5], 64, 64, 4
    $region17: #{forward.1} parent=1 // pred_fallthru
      _
    // Predicated region
    $region18: #{forward.1} parent=1 // pred_check
      _
    $region19: #{forward.1} parent=1 // pred_check_branch
      %41 = sbr.rel (0) target = $region21
    $region20: #{forward.1} parent=1 // pred_region
      _
    $region21: #{forward.1} parent=1 // pred_fallthru
      _
    // Predicated region
    $region22: #{forward.1} parent=1 // pred_check
      _
    $region23: #{forward.1} parent=1 // pred_check_branch
      %43 = sbr.rel (0) target = $region25
    $region24: #{forward.1} parent=1 // pred_region
      %44 = dma.done [#allocation3], 1024
    $region25: #{forward.1} parent=1 // pred_fallthru
      _
    // Predicated region
    $region26: #{forward.1} parent=1 // pred_check
      _
    $region27: #{forward.1} parent=1 // pred_check_branch
      %46 = sbr.rel (0) target = $region29
    $region28: #{forward.1} parent=1 // pred_region
      %47 = dma.done [#allocation5], 1024
    $region29: #{forward.1} parent=1 // pred_fallthru
      _
    %v49 = vld [vmem:[%s0] sm:$0xf]
    %v50 = vld [vmem:[%s0 + $0x4] sm:$0xf]
    %v51 = vld [vmem:[%s1] sm:$0xf]
    %v52 = vld [vmem:[%s1 + $0x4] sm:$0xf]
    %v53 = vld [vmem:[%s4] sm:$0x1]
    %v54 = vlaneseq
    %v55 = vshrl.u32 %v54, 7
    %v56 = vsub.s32 0, %v55
    %v57 = vrot.slane %v53, %v56
    %v60 = vunpack.c.l.b16 %v49
    %v61 = vunpack.c.l.b16 %v50
    %v62 = vpack.c.b16 %v61, %v60
    %v65 = vunpack.c.l.b16 %v51
    %v66 = vunpack.c.l.b16 %v52
    %v67 = vpack.c.b16 %v66, %v65
    %vm69 = vcmask 130048
    %v71 = vsel %vm69, %v62, 0
    %73 = vmatprep.subr.bf16.mxu0 0
    %74 = vmatpush1.bf16.msra.mxu0 0
    %75 = vmatprep.subr.bf16.mxu0 0
    %76 = vmatpush1.bf16.msra.mxu0 0
    %77 = vmatprep.subr.bf16.mxu0 0
    %78 = vmatpush1.bf16.msra.mxu0 0
    %79 = vmatprep.subr.bf16.mxu0 0
    %80 = vmatpush1.bf16.msra.mxu0 0
    %81 = vmatprep.subr.bf16.mxu0 0
    %82 = vmatpush1.bf16.msra.mxu0 0
    %83 = vmatprep.subr.bf16.mxu0 0
    %84 = vmatpush1.bf16.msra.mxu0 0
    %85 = vmatprep.subr.bf16.mxu0 0
    %86 = vmatpush1.bf16.msra.mxu0 0
    %87 = vmatprep.subr.bf16.mxu0 0
    %88 = vmatpush1.bf16.msra.mxu0 %v67
    %89 = vmatprep.subr.bf16.mxu0 0
    %90 = vmatpush2.bf16.msra.mxu0 0
    %91 = vmatprep.subr.bf16.mxu0 0
    %92 = vmatpush2.bf16.msra.mxu0 0
    %93 = vmatprep.subr.bf16.mxu0 0
    %94 = vmatpush2.bf16.msra.mxu0 0
    %95 = vmatprep.subr.bf16.mxu0 0
    %96 = vmatpush2.bf16.msra.mxu0 0
    %97 = vmatprep.subr.bf16.mxu0 0
    %98 = vmatpush2.bf16.msra.mxu0 0
    %99 = vmatprep.subr.bf16.mxu0 0
    %100 = vmatpush2.bf16.msra.mxu0 0
    %101 = vmatprep.subr.bf16.mxu0 0
    %102 = vmatpush2.bf16.msra.mxu0 0
    %103 = vmatprep.subr.bf16.mxu0 0
    %104 = vmatpush2.bf16.msra.mxu0 0
    %105 = vmatprep.mubr.bf16.mxu0 0
    %106 = vmatmul.mubr.bf16.gmra.mxu0 %v71
    %v107 = vpop.f32.mrf.mxu0
    %v108 = vadd.f32 %v57, %v107
    %v109 = vpop.f32.mrf.mxu0
    %v110 = vpop.f32.mrf.mxu0
    %v111 = vadd.f32 %v57, %v110
    %v112 = vpop.f32.mrf.mxu0
    %113 = vdwg.mxu0
    %v114 = vmax.f32 %v108, 0.0
    %v115 = vmax.f32 %v111, 0.0
    %v116 = vpack.c.bf16 %v115, %v114
    %v117 = vld [vmem:[#allocation2] sm:$0xf]
    %v118 = vld [vmem:[#allocation2 + $0x4] sm:$0xf]
    %v119 = vld [vmem:[#allocation2 + $0x8] sm:$0xf]
    %v120 = vld [vmem:[#allocation2 + $0xc] sm:$0xf]
    %v121 = vld [vmem:[#allocation2 + $0x10] sm:$0xf]
    %v122 = vld [vmem:[#allocation2 + $0x14] sm:$0xf]
    %v123 = vld [vmem:[#allocation2 + $0x18] sm:$0xf]
    %v124 = vld [vmem:[#allocation2 + $0x1c] sm:$0xf]
    %v125 = vld [vmem:[#allocation2 + $0x20] sm:$0xf]
    %v126 = vld [vmem:[#allocation2 + $0x24] sm:$0xf]
    %v127 = vld [vmem:[#allocation2 + $0x28] sm:$0xf]
    %v128 = vld [vmem:[#allocation2 + $0x2c] sm:$0xf]
    %v129 = vld [vmem:[#allocation2 + $0x30] sm:$0xf]
    %v130 = vld [vmem:[#allocation2 + $0x34] sm:$0xf]
    %v131 = vld [vmem:[#allocation2 + $0x38] sm:$0xf]
    %v132 = vld [vmem:[#allocation2 + $0x3c] sm:$0xf]
    %v133 = vld [vmem:[%s4 + $0x1] sm:$0x1]
    %v134 = vlaneseq
    %v135 = vshrl.u32 %v134, 7
    %v136 = vsub.s32 0, %v135
    %v137 = vrot.slane %v133, %v136
    %v154 = vunpack.c.l.b16 %v117
    %v155 = vunpack.c.l.b16 %v118
    %v156 = vunpack.c.l.b16 %v119
    %v157 = vunpack.c.l.b16 %v120
    %v158 = vunpack.c.l.b16 %v121
    %v159 = vunpack.c.l.b16 %v122
    %v160 = vunpack.c.l.b16 %v123
    %v161 = vunpack.c.l.b16 %v124
    %v162 = vunpack.c.l.b16 %v125
    %v163 = vunpack.c.l.b16 %v126
    %v164 = vunpack.c.l.b16 %v127
    %v165 = vunpack.c.l.b16 %v128
    %v166 = vunpack.c.l.b16 %v129
    %v167 = vunpack.c.l.b16 %v130
    %v168 = vunpack.c.l.b16 %v131
    %v169 = vunpack.c.l.b16 %v132
    %v170 = vpack.c.b16 %v155, %v154
    %v171 = vpack.c.b16 %v157, %v156
    %v172 = vpack.c.b16 %v159, %v158
    %v173 = vpack.c.b16 %v161, %v160
    %v174 = vpack.c.b16 %v163, %v162
    %v175 = vpack.c.b16 %v165, %v164
    %v176 = vpack.c.b16 %v167, %v166
    %v177 = vpack.c.b16 %v169, %v168
    %186 = vmatprep.subr.bf16.mxu0 0
    %187 = vmatpush1.bf16.msra.mxu0 %v177
    %188 = vmatprep.subr.bf16.mxu0 0
    %189 = vmatpush1.bf16.msra.mxu0 %v176
    %190 = vmatprep.subr.bf16.mxu0 0
    %191 = vmatpush1.bf16.msra.mxu0 %v175
    %192 = vmatprep.subr.bf16.mxu0 0
    %193 = vmatpush1.bf16.msra.mxu0 %v174
    %194 = vmatprep.subr.bf16.mxu0 0
    %195 = vmatpush1.bf16.msra.mxu0 %v173
    %196 = vmatprep.subr.bf16.mxu0 0
    %197 = vmatpush1.bf16.msra.mxu0 %v172
    %198 = vmatprep.subr.bf16.mxu0 0
    %199 = vmatpush1.bf16.msra.mxu0 %v171
    %200 = vmatprep.subr.bf16.mxu0 0
    %201 = vmatpush1.bf16.msra.mxu0 %v170
    %202 = vmatprep.subr.bf16.mxu0 0
    %203 = vmatpush2.bf16.msra.mxu0 0
    %204 = vmatprep.subr.bf16.mxu0 0
    %205 = vmatpush2.bf16.msra.mxu0 0
    %206 = vmatprep.subr.bf16.mxu0 0
    %207 = vmatpush2.bf16.msra.mxu0 0
    %208 = vmatprep.subr.bf16.mxu0 0
    %209 = vmatpush2.bf16.msra.mxu0 0
    %210 = vmatprep.subr.bf16.mxu0 0
    %211 = vmatpush2.bf16.msra.mxu0 0
    %212 = vmatprep.subr.bf16.mxu0 0
    %213 = vmatpush2.bf16.msra.mxu0 0
    %214 = vmatprep.subr.bf16.mxu0 0
    %215 = vmatpush2.bf16.msra.mxu0 0
    %216 = vmatprep.subr.bf16.mxu0 0
    %217 = vmatpush2.bf16.msra.mxu0 0
    %218 = vmatprep.mubr.bf16.mxu0 0
    %219 = vmatmul.mubr.bf16.gmra.mxu0 %v116
    %v220 = vpop.f32.mrf.mxu0
    %v221 = vadd.f32 %v137, %v220
    %v222 = vpop.f32.mrf.mxu0
    %v223 = vpop.f32.mrf.mxu0
    %v224 = vadd.f32 %v137, %v223
    %v225 = vpop.f32.mrf.mxu0
    %226 = vdwg.mxu0
    %v227 = vmax.f32 %v221, 0.0
    %v228 = vmax.f32 %v224, 0.0
    %v229 = vpack.c.bf16 %v228, %v227
    %v230 = vld [vmem:[#allocation4] sm:$0xf]
    %v231 = vld [vmem:[#allocation4 + $0x4] sm:$0xf]
    %v232 = vld [vmem:[#allocation4 + $0x8] sm:$0xf]
    %v233 = vld [vmem:[#allocation4 + $0xc] sm:$0xf]
    %v234 = vld [vmem:[#allocation4 + $0x10] sm:$0xf]
    %v235 = vld [vmem:[#allocation4 + $0x14] sm:$0xf]
    %v236 = vld [vmem:[#allocation4 + $0x18] sm:$0xf]
    %v237 = vld [vmem:[#allocation4 + $0x1c] sm:$0xf]
    %v238 = vld [vmem:[#allocation4 + $0x20] sm:$0xf]
    %v239 = vld [vmem:[#allocation4 + $0x24] sm:$0xf]
    %v240 = vld [vmem:[#allocation4 + $0x28] sm:$0xf]
    %v241 = vld [vmem:[#allocation4 + $0x2c] sm:$0xf]
    %v242 = vld [vmem:[#allocation4 + $0x30] sm:$0xf]
    %v243 = vld [vmem:[#allocation4 + $0x34] sm:$0xf]
    %v244 = vld [vmem:[#allocation4 + $0x38] sm:$0xf]
    %v245 = vld [vmem:[#allocation4 + $0x3c] sm:$0xf]
    %v246 = vld [vmem:[%s4 + $0x2] sm:$0x1]
    %v247 = vlaneseq
    %v248 = vshrl.u32 %v247, 7
    %v249 = vsub.s32 0, %v248
    %v250 = vrot.slane %v246, %v249
    %v267 = vunpack.c.l.b16 %v230
    %v268 = vunpack.c.l.b16 %v231
    %v269 = vunpack.c.l.b16 %v232
    %v270 = vunpack.c.l.b16 %v233
    %v271 = vunpack.c.l.b16 %v234
    %v272 = vunpack.c.l.b16 %v235
    %v273 = vunpack.c.l.b16 %v236
    %v274 = vunpack.c.l.b16 %v237
    %v275 = vunpack.c.l.b16 %v238
    %v276 = vunpack.c.l.b16 %v239
    %v277 = vunpack.c.l.b16 %v240
    %v278 = vunpack.c.l.b16 %v241
    %v279 = vunpack.c.l.b16 %v242
    %v280 = vunpack.c.l.b16 %v243
    %v281 = vunpack.c.l.b16 %v244
    %v282 = vunpack.c.l.b16 %v245
    %v283 = vpack.c.b16 %v268, %v267
    %v284 = vpack.c.b16 %v270, %v269
    %v285 = vpack.c.b16 %v272, %v271
    %v286 = vpack.c.b16 %v274, %v273
    %v287 = vpack.c.b16 %v276, %v275
    %v288 = vpack.c.b16 %v278, %v277
    %v289 = vpack.c.b16 %v280, %v279
    %v290 = vpack.c.b16 %v282, %v281
    %299 = vmatprep.subr.bf16.mxu0 0
    %300 = vmatpush1.bf16.msra.mxu0 %v290
    %301 = vmatprep.subr.bf16.mxu0 0
    %302 = vmatpush1.bf16.msra.mxu0 %v289
    %303 = vmatprep.subr.bf16.mxu0 0
    %304 = vmatpush1.bf16.msra.mxu0 %v288
    %305 = vmatprep.subr.bf16.mxu0 0
    %306 = vmatpush1.bf16.msra.mxu0 %v287
    %307 = vmatprep.subr.bf16.mxu0 0
    %308 = vmatpush1.bf16.msra.mxu0 %v286
    %309 = vmatprep.subr.bf16.mxu0 0
    %310 = vmatpush1.bf16.msra.mxu0 %v285
    %311 = vmatprep.subr.bf16.mxu0 0
    %312 = vmatpush1.bf16.msra.mxu0 %v284
    %313 = vmatprep.subr.bf16.mxu0 0
    %314 = vmatpush1.bf16.msra.mxu0 %v283
    %315 = vmatprep.subr.bf16.mxu0 0
    %316 = vmatpush2.bf16.msra.mxu0 0
    %317 = vmatprep.subr.bf16.mxu0 0
    %318 = vmatpush2.bf16.msra.mxu0 0
    %319 = vmatprep.subr.bf16.mxu0 0
    %320 = vmatpush2.bf16.msra.mxu0 0
    %321 = vmatprep.subr.bf16.mxu0 0
    %322 = vmatpush2.bf16.msra.mxu0 0
    %323 = vmatprep.subr.bf16.mxu0 0
    %324 = vmatpush2.bf16.msra.mxu0 0
    %325 = vmatprep.subr.bf16.mxu0 0
    %326 = vmatpush2.bf16.msra.mxu0 0
    %327 = vmatprep.subr.bf16.mxu0 0
    %328 = vmatpush2.bf16.msra.mxu0 0
    %329 = vmatprep.subr.bf16.mxu0 0
    %330 = vmatpush2.bf16.msra.mxu0 0
    %331 = vmatprep.mubr.bf16.mxu0 0
    %332 = vmatmul.mubr.bf16.gmra.mxu0 %v229
    %v333 = vpop.f32.mrf.mxu0
    %v334 = vadd.f32 %v250, %v333
    %v335 = vpop.f32.mrf.mxu0
    %v336 = vpop.f32.mrf.mxu0
    %v337 = vadd.f32 %v250, %v336
    %v338 = vpop.f32.mrf.mxu0
    %339 = vdwg.mxu0
    %340 = vst [vmem:[%s5] sm:$0xff] %v334
    %341 = vst [vmem:[%s5 + $0x8] sm:$0xff] %v337
    // Predicated region
    $region30: #{forward.1} parent=1 // pred_check
      _
    $region31: #{forward.1} parent=1 // pred_check_branch
      %343 = sbr.rel (0) target = $region33
    $region32: #{forward.1} parent=1 // pred_region
      _
    $region33: #{forward.1} parent=1 // pred_fallthru
      _
    // Predicated region
    $region34: #{forward.1} parent=1 // pred_check
      _
    $region35: #{forward.1} parent=1 // pred_check_branch
      %345 = sbr.rel (0) target = $region37
    $region36: #{forward.1} parent=1 // pred_region
      _
    $region37: #{forward.1} parent=1 // pred_fallthru
      _
    %346 = vsyncpa [#allocation3], 1
    %347 = vsyncpa [#allocation5], 1

</llo_original>
